<compile_context>
chip_gen: v5e
topology: v5e:2x2
jax: 0.10.0
libtpu: 0.0.40
codegen_flags: <defaults>
</compile_context>

<pallas_src>
import jax
import jax.numpy as jnp
from jax.experimental import pallas as pl
from jax.experimental.pallas import tpu as pltpu


_TARGET_BLOCK_BYTES = 2 << 20  # ~2 MiB per x block -> ~10-12 MiB pipelined footprint.


def _add_pos_kernel(x_ref, pos_ref, out_ref):
    # x_ref/out_ref: (bb, R, D); pos_ref: (R, D) broadcast over the batch block.
    out_ref[...] = x_ref[...] + pos_ref[...]


def _add_pos_cls_kernel(x_ref, pos_ref, cls_ref, out_ref):
    # x_ref: (bb, N, D); pos_ref: (N, D); cls_ref: (1, D); out_ref: (bb, N+1, D).
    # Row 0 of every batch element gets the precomputed (cls_token + cls_pos) row;
    # the body lands at token offset 1 (in-VMEM sublane shift, hidden under the
    # HBM-bound streaming add). HBM DMAs remain full aligned block copies.
    bb, n, d = x_ref.shape
    out_ref[:, 0:1, :] = jnp.broadcast_to(cls_ref[...], (bb, 1, d))
    out_ref[:, pl.ds(1, n), :] = x_ref[...] + pos_ref[...]


def _token_block(n_rows, d, itemsize, target=_TARGET_BLOCK_BYTES):
    """Rows per block along the token axis: full axis if small (or not a multiple
    of 8, which is always a legal full-dim block), else a multiple-of-8 divisor
    near the VMEM target."""
    if n_rows * d * itemsize <= target or n_rows % 8 != 0:
        return n_rows
    r = min(n_rows, max(8, (target // (d * itemsize)) // 8 * 8))
    while n_rows % r != 0:
        r -= 8
    return r


def _batch_block(b, rows, d, itemsize, target=_TARGET_BLOCK_BYTES):
    """Batch elements per block: the largest divisor of b within the byte target."""
    per = max(1, rows * d * itemsize)
    bb = max(1, min(b, target // per))
    while b % bb != 0:
        bb -= 1
    return bb


def _compiler_params(block_bytes, dimension_semantics):
    # Rough pipelined-VMEM footprint: every block double-buffered, plus slack.
    est = 2 * sum(block_bytes) + (2 << 20)
    kwargs = dict(dimension_semantics=dimension_semantics)
    if est > (16 << 20):  # above the smallest (v5e) scoped-VMEM default
        kwargs["vmem_limit_bytes"] = int(min(est, 96 << 20))
    return pltpu.CompilerParams(**kwargs)


class SpatialTemporalClsPositionalEncoding:
    """JAX/Pallas port of the PyTorch module. Parameters are created in-script."""

    def __init__(self, embed_dim, patch_embed_shape, sep_pos_embed=False,
                 has_cls=True, key=None):
        assert len(patch_embed_shape) == 3, "Patch_embed_shape should be (T, H, W)."
        self.embed_dim = embed_dim
        self.patch_embed_shape = tuple(patch_embed_shape)
        self.sep_pos_embed = sep_pos_embed
        self.has_cls = has_cls
        self.num_spatial_patch = patch_embed_shape[1] * patch_embed_shape[2]
        self.num_temporal_patch = patch_embed_shape[0]
        num_patches = (self.num_spatial_patch * self.num_temporal_patch
                       + (1 if has_cls else 0))

        # NOTE: PyTorch initializes these to zeros (learnable). Small random values
        # are used here so the kernel math is actually exercised by the check.
        key = jax.random.PRNGKey(0) if key is None else key
        k0, k1, k2, k3 = jax.random.split(key, 4)
        if has_cls:
            self.cls_token = 0.02 * jax.random.normal(k0, (1, 1, embed_dim), jnp.float32)
        if sep_pos_embed:
            self.pos_embed_spatial = 0.02 * jax.random.normal(
                k1, (1, self.num_spatial_patch, embed_dim), jnp.float32)
            self.pos_embed_temporal = 0.02 * jax.random.normal(
                k2, (1, self.num_temporal_patch, embed_dim), jnp.float32)
            if has_cls:
                self.pos_embed_class = 0.02 * jax.random.normal(
                    k3, (1, 1, embed_dim), jnp.float32)
        else:
            self.pos_embed = 0.02 * jax.random.normal(
                k1, (1, num_patches, embed_dim), jnp.float32)

        # Fused positional tables: parameter-only => precompute once, cache the
        # per-dtype casts so the hot path is a single streaming add.
        # TODO(synk): if the pos/cls parameters are trained, recompute this fused
        # table per call (it stays cheap parameter-only glue outside the kernel).
        self._pos_body_f32, self._cls_row_f32 = self._build_fused_tables()
        self._pos_cache = {}
        self._cls_cache = {}
        self._fused_cls_ok = None  # set on the first has_cls call

    # ---- parameter-only precompute ------------------------------------------------
    def _build_fused_tables(self):
        if self.sep_pos_embed:
            body = (jnp.tile(self.pos_embed_spatial, (1, self.num_temporal_patch, 1))
                    + jnp.repeat(self.pos_embed_temporal, self.num_spatial_patch,
                                 axis=1))[0]                               # (N, D)
            cls_row = ((self.cls_token[0, 0] + self.pos_embed_class[0, 0])[None, :]
                       if self.has_cls else None)                          # (1, D)
        else:
            if self.has_cls:
                body = self.pos_embed[0, 1:, :]                            # (N, D)
                cls_row = (self.cls_token[0, 0] + self.pos_embed[0, 0])[None, :]
            else:
                body = self.pos_embed[0]
                cls_row = None
        return body, cls_row

    def _pos_body(self, dtype):
        tab = self._pos_cache.get(dtype)
        if tab is None:
            tab = self._pos_body_f32.astype(dtype)
            self._pos_cache[dtype] = tab
        return tab

    def _cls_row(self, dtype):
        row = self._cls_cache.get(dtype)
        if row is None:
            row = self._cls_row_f32.astype(dtype)
            self._cls_cache[dtype] = row
        return row

    def get_patch_embed_shape(self):
        return self.patch_embed_shape

    # ---- Pallas paths ---------------------------------------------------------------
    def _add_pos(self, x):
        """out[b, r] = x[b, r] + pos_body[r]   (no cls row in the output)."""
        b, n, d = x.shape
        pos = self._pos_body(x.dtype)                       # (N, D), cached cast
        itemsize = x.dtype.itemsize
        r = _token_block(n, d, itemsize)
        bb = _batch_block(b, r, d, itemsize)
        x_bytes = bb * r * d * itemsize
        pos_bytes = r * d * itemsize
        return pl.pallas_call(
            _add_pos_kernel,
            out_shape=jax.ShapeDtypeStruct((b, n, d), x.dtype),
            grid=(n // r, b // bb),   # token chunks outer -> pos block is revisited
            in_specs=[
                pl.BlockSpec((bb, r, d), lambda j, i: (i, j, 0)),
                pl.BlockSpec((r, d), lambda j, i: (j, 0)),
            ],
            out_specs=pl.BlockSpec((bb, r, d), lambda j, i: (i, j, 0)),
            compiler_params=_compiler_params(
                [x_bytes, pos_bytes, x_bytes], ("parallel", "parallel")),
        )(x, pos)

    def _add_pos_cls_fused(self, x):
        """out[b, 0] = cls_token + cls_pos ; out[b, 1 + r] = x[b, r] + pos_body[r]."""
        b, n, d = x.shape
        pos = self._pos_body(x.dtype)                       # (N, D)
        cls_row = self._cls_row(x.dtype)                    # (1, D)
        itemsize = x.dtype.itemsize
        bb = _batch_block(b, n + 1, d, itemsize)
        x_bytes = bb * n * d * itemsize
        out_bytes = bb * (n + 1) * d * itemsize
        pos_bytes = n * d * itemsize
        return pl.pallas_call(
            _add_pos_cls_kernel,
            out_shape=jax.ShapeDtypeStruct((b, n + 1, d), x.dtype),
            grid=(b // bb,),
            in_specs=[
                pl.BlockSpec((bb, n, d), lambda i: (i, 0, 0)),
                pl.BlockSpec((n, d), lambda i: (0, 0)),       # fetched once (revisit)
                pl.BlockSpec((1, d), lambda i: (0, 0)),
            ],
            out_specs=pl.BlockSpec((bb, n + 1, d), lambda i: (i, 0, 0)),
            compiler_params=_compiler_params(
                [x_bytes, pos_bytes, d * itemsize, out_bytes], ("parallel",)),
        )(x, pos, cls_row)

    def __call__(self, x):
        b, n, d = x.shape
        assert n == self.num_spatial_patch * self.num_temporal_patch
        assert d == self.embed_dim

        if not self.has_cls:
            return self._add_pos(x)

        if self._fused_cls_ok is not False:
            try:
                out = self._add_pos_cls_fused(x)
                if self._fused_cls_ok is None:
                    out = jax.block_until_ready(out)   # surface lowering issues once
                    self._fused_cls_ok = True
                return out
            except Exception:
                # Safety net only: toolchains without unaligned sublane stores.
                self._fused_cls_ok = False

        # Fallback: aligned Pallas add for the body + single cls-row concat.
        body = self._add_pos(x)
        cls_rows = jnp.broadcast_to(self._cls_row(x.dtype)[None], (b, 1, d))
        return jnp.concatenate([cls_rows, body], axis=1)


def _reference_forward(mod, x):
    """Pure-jnp mirror of the PyTorch forward, for validation."""
    b = x.shape[0]
    if mod.has_cls:
        cls_tokens = jnp.broadcast_to(mod.cls_token, (b, 1, mod.embed_dim))
        x = jnp.concatenate([cls_tokens, x], axis=1)
    if mod.sep_pos_embed:
        pos_embed = (jnp.tile(mod.pos_embed_spatial, (1, mod.num_temporal_patch, 1))
                     + jnp.repeat(mod.pos_embed_temporal, mod.num_spatial_patch, axis=1))
        if mod.has_cls:
            pos_embed = jnp.concatenate([mod.pos_embed_class, pos_embed], axis=1)
        x = x + pos_embed
    else:
        x = x + mod.pos_embed
    return x


if __name__ == "__main__":
    B = 2
    EMBED_DIM = 128                         # lane-aligned embed dim
    ok = True
    for patch_shape in ((2, 4, 4), (2, 3, 3)):   # S=16 (8-aligned) and S=9 (odd)
        T, H, W = patch_shape
        N = T * H * W
        kx, kp = jax.random.split(jax.random.PRNGKey(0))
        x = jax.random.normal(kx, (B, N, EMBED_DIM), jnp.float32)
        for sep_pos_embed in (False, True):
            for has_cls in (False, True):
                mod = SpatialTemporalClsPositionalEncoding(
                    EMBED_DIM, patch_shape, sep_pos_embed=sep_pos_embed,
                    has_cls=has_cls, key=kp)
                out = jax.block_until_ready(mod(x))
                ref = _reference_forward(mod, x)
                expected_tokens = N + (1 if has_cls else 0)
                assert out.shape == (B, expected_tokens, EMBED_DIM), out.shape
                if not jnp.allclose(out, ref, atol=1e-6, rtol=1e-6):
                    ok = False
    if ok:
        print("KERNEL_OK")
</pallas_src>

<mosaic_0001>
module attributes {stable_mosaic.version = 11 : i64} {
  func.func @_add_pos_kernel(%arg0: i32, %arg1: i32, %arg2: memref<2x32x128xf32, #tpu.memory_space<vmem>>, %arg3: memref<32x128xf32, #tpu.memory_space<vmem>>, %arg4: memref<2x32x128xf32, #tpu.memory_space<vmem>>) attributes {dimension_semantics = [#tpu.dimension_semantics<parallel>, #tpu.dimension_semantics<parallel>], iteration_bounds = array<i64: 1, 1>, scalar_prefetch = 0 : i64, scratch_operands = 0 : i64, tpu.core_type = #tpu.core_type<tc>, window_params = [{transform_indices = @transform_0, window_bounds = array<i64: 2, 32, 128>}, {transform_indices = @transform_1, window_bounds = array<i64: 32, 128>}, {transform_indices = @transform_2, window_bounds = array<i64: 2, 32, 128>}]} {
    %c0 = arith.constant 0 : index
    %c0_0 = arith.constant 0 : index
    %c0_1 = arith.constant 0 : index
    %0 = vector.load %arg2[%c0, %c0_0, %c0_1] : memref<2x32x128xf32, #tpu.memory_space<vmem>>, vector<2x32x128xf32>
    %c0_2 = arith.constant 0 : index
    %c0_3 = arith.constant 0 : index
    %1 = vector.load %arg3[%c0_2, %c0_3] : memref<32x128xf32, #tpu.memory_space<vmem>>, vector<32x128xf32>
    %2 = vector.shape_cast %1 : vector<32x128xf32> to vector<1x32x128xf32>
    %3 = vector.broadcast %2 : vector<1x32x128xf32> to vector<2x32x128xf32>
    %4 = arith.addf %0, %3 : vector<2x32x128xf32>
    %c0_4 = arith.constant 0 : index
    %c0_5 = arith.constant 0 : index
    %c0_6 = arith.constant 0 : index
    %5 = vector.load %arg4[%c0_4, %c0_5, %c0_6] : memref<2x32x128xf32, #tpu.memory_space<vmem>>, vector<2x32x128xf32>
    tpu.vector_store %arg4[%c0_4, %c0_5, %c0_6], %4 {strides = array<i32>} : memref<2x32x128xf32, #tpu.memory_space<vmem>>, vector<2x32x128xf32>,
    return
  }
  func.func @transform_0(%arg0: i32, %arg1: i32) -> (i32, i32, i32) {
    %c0_i32 = arith.constant 0 : i32
    %c0_i32_0 = arith.constant 0 : i32
    return %arg1, %arg0, %c0_i32 : i32, i32, i32
  }
  func.func @transform_1(%arg0: i32, %arg1: i32) -> (i32, i32) {
    %c0_i32 = arith.constant 0 : i32
    %c0_i32_0 = arith.constant 0 : i32
    return %arg0, %c0_i32 : i32, i32
  }
  func.func @transform_2(%arg0: i32, %arg1: i32) -> (i32, i32, i32) {
    %c0_i32 = arith.constant 0 : i32
    %c0_i32_0 = arith.constant 0 : i32
    return %arg1, %arg0, %c0_i32 : i32, i32, i32
  }
}

</mosaic_0001>

<llo_original>
// kernel: tpu_custom_call.1
$region0: #{tpu_custom_call.1}
  #allocation0 [shape = 'u32[]', space=smem, size = 0x4, offset = 0x4, fixed_abs, tag = 'smem constant byte address 0x4 - core index']
  #allocation1 [shape = 'u32[72,128]{1,0:T(1,128)}', space=vmem, size = 0x9000, scoped, tag = 'internal scratch']
  %s0 = inlined_call_operand.hbm [shape: f32[2,32,128], index: 0, kind: input, shape index: {}]
  %s1 = inlined_call_operand.hbm [shape: f32[32,128], index: 1, kind: input, shape index: {}]
  %s2 = inlined_call_operand.hbm [shape: f32[2,32,128], index: 2, kind: output, shape index: {}]
  %s3 = sld [smem:[#allocation0]]
  $region26: #{tpu_custom_call.1} parent=0
    _
  %s5 = ssub.s32 1, %s3
  %s6 = scalar_select 0, %s5, %s3
  $region1: #{tpu_custom_call.1} parent=0
    #allocation2 [shape = 'u8[32768]{0}', space=vmem, size = 0x8000, scoped, tag = 'input window, operand 0, single buffered']
    #allocation3 [shape = 's32[1]{0}', space=sflag, size = 0x4, scoped, tag = 'scoped memory for tpu_custom_call.1']
    #allocation4 [shape = 's32[1]{0}', space=sflag, size = 0x4, scoped, tag = 'scoped memory for tpu_custom_call.1']
    #allocation5 [shape = 'u8[16384]{0}', space=vmem, size = 0x4000, scoped, tag = 'input window, operand 1, single buffered']
    #allocation6 [shape = 's32[1]{0}', space=sflag, size = 0x4, scoped, tag = 'scoped memory for tpu_custom_call.1']
    #allocation7 [shape = 'u8[32768]{0}', space=vmem, size = 0x8000, scoped, tag = 'output window, operand 0, single buffered']
    %7 = vsyncpa [#allocation3], 0
    %8 = vsyncpa [#allocation6], 0
    %9 = vsyncpa [#allocation4], 0
    // Predicated region
    $region2: #{tpu_custom_call.1} parent=1 // pred_check
      _
    $region3: #{tpu_custom_call.1} parent=1 // pred_check_branch
      %11 = sbr.rel (0) target = $region5
    $region4: #{tpu_custom_call.1} parent=1 // pred_region
      %13 = vsyncadd [#allocation3], 0
      %s14 = sshll.u32 %s0, 4
      %s15 = int_to_ptr.hbm [resolvable:$true] %s14
      %s16 = sshll.u32 [#allocation2], 4
      %s17 = int_to_ptr.vmem [resolvable:$true] %s16
      %22 = dma.hbm_to_vmem [thread:$0]  %s15, 1024, %s17, [#allocation3], 128, 128, 8
    $region5: #{tpu_custom_call.1} parent=1 // pred_fallthru
      _
    // Predicated region
    $region6: #{tpu_custom_call.1} parent=1 // pred_check
      _
    $region7: #{tpu_custom_call.1} parent=1 // pred_check_branch
      %24 = sbr.rel (0) target = $region9
    $region8: #{tpu_custom_call.1} parent=1 // pred_region
      %26 = vsyncadd [#allocation6], 0
      %s27 = sshll.u32 %s1, 4
      %s28 = int_to_ptr.hbm [resolvable:$true] %s27
      %s29 = sshll.u32 [#allocation5], 4
      %s30 = int_to_ptr.vmem [resolvable:$true] %s29
      %35 = dma.hbm_to_vmem [thread:$0]  %s28, 512, %s30, [#allocation6], 128, 128, 8
    $region9: #{tpu_custom_call.1} parent=1 // pred_fallthru
      _
    // Predicated region
    $region10: #{tpu_custom_call.1} parent=1 // pred_check
      _
    $region11: #{tpu_custom_call.1} parent=1 // pred_check_branch
      %37 = sbr.rel (0) target = $region13
    $region12: #{tpu_custom_call.1} parent=1 // pred_region
      %39 = dma.done [#allocation3], 1024
    $region13: #{tpu_custom_call.1} parent=1 // pred_fallthru
      _
    // Predicated region
    $region14: #{tpu_custom_call.1} parent=1 // pred_check
      _
    $region15: #{tpu_custom_call.1} parent=1 // pred_check_branch
      %41 = sbr.rel (0) target = $region17
    $region16: #{tpu_custom_call.1} parent=1 // pred_region
      %43 = dma.done [#allocation6], 512
    $region17: #{tpu_custom_call.1} parent=1 // pred_fallthru
      _
    %v44 = vld [vmem:[#allocation2] sm:$0xff]
    %v45 = vld [vmem:[#allocation2 + $0x8] sm:$0xff]
    %v46 = vld [vmem:[#allocation2 + $0x10] sm:$0xff]
    %v47 = vld [vmem:[#allocation2 + $0x18] sm:$0xff]
    %v48 = vld [vmem:[#allocation2 + $0x20] sm:$0xff]
    %v49 = vld [vmem:[#allocation2 + $0x28] sm:$0xff]
    %v50 = vld [vmem:[#allocation2 + $0x30] sm:$0xff]
    %v51 = vld [vmem:[#allocation2 + $0x38] sm:$0xff]
    %v52 = vld [vmem:[#allocation5] sm:$0xff]
    %v53 = vld [vmem:[#allocation5 + $0x8] sm:$0xff]
    %v54 = vld [vmem:[#allocation5 + $0x10] sm:$0xff]
    %v55 = vld [vmem:[#allocation5 + $0x18] sm:$0xff]
    %v56 = vadd.f32 %v44, %v52
    %v57 = vadd.f32 %v45, %v53
    %v58 = vadd.f32 %v46, %v54
    %v59 = vadd.f32 %v47, %v55
    %v60 = vadd.f32 %v48, %v52
    %v61 = vadd.f32 %v49, %v53
    %v62 = vadd.f32 %v50, %v54
    %v63 = vadd.f32 %v51, %v55
    %64 = vst [vmem:[#allocation7] sm:$0xff] %v56
    %65 = vst [vmem:[#allocation7 + $0x8] sm:$0xff] %v57
    %66 = vst [vmem:[#allocation7 + $0x10] sm:$0xff] %v58
    %67 = vst [vmem:[#allocation7 + $0x18] sm:$0xff] %v59
    %68 = vst [vmem:[#allocation7 + $0x20] sm:$0xff] %v60
    %69 = vst [vmem:[#allocation7 + $0x28] sm:$0xff] %v61
    %70 = vst [vmem:[#allocation7 + $0x30] sm:$0xff] %v62
    %71 = vst [vmem:[#allocation7 + $0x38] sm:$0xff] %v63
    // Predicated region
    $region18: #{tpu_custom_call.1} parent=1 // pred_check
      _
    $region19: #{tpu_custom_call.1} parent=1 // pred_check_branch
      %73 = sbr.rel (0) target = $region21
    $region20: #{tpu_custom_call.1} parent=1 // pred_region
      %75 = vsyncadd [#allocation4], 0
      %s76 = sshll.u32 [#allocation7], 4
      %s77 = int_to_ptr.vmem [resolvable:$true] %s76
      %s78 = sshll.u32 %s2, 4
      %s79 = int_to_ptr.hbm [resolvable:$true] %s78
      %84 = dma.vmem_to_hbm [thread:$0]  %s77, 1024, %s79, [#allocation4], 128, 128, 8
    $region21: #{tpu_custom_call.1} parent=1 // pred_fallthru
      _
    // Predicated region
    $region22: #{tpu_custom_call.1} parent=1 // pred_check
      _
    $region23: #{tpu_custom_call.1} parent=1 // pred_check_branch
      %86 = sbr.rel (0) target = $region25
    $region24: #{tpu_custom_call.1} parent=1 // pred_region
      %88 = dma.done [#allocation4], 1024
    $region25: #{tpu_custom_call.1} parent=1 // pred_fallthru
      _
    %89 = vsyncpa [#allocation3], 1
    %90 = vsyncpa [#allocation6], 1
    %91 = vsyncpa [#allocation4], 1

</llo_original>
